<compile_context>
chip_gen: v7x
topology: tpu7x:2x2x1
jax: 0.10.0
libtpu: 0.0.40
codegen_flags: <defaults>
</compile_context>

<pallas_src>
import functools

import jax
import jax.numpy as jnp
from jax import lax
from jax.experimental import pallas as pl
from jax.experimental.pallas import tpu as pltpu


def _ff_kernel(x_ref, w1_ref, b1_ref, w2_ref, b2_ref, gamma_ref, beta_ref,
               o_ref, *, pre_lnorm: bool, eps: float):
    """Fused positionwise-FF: [LN] -> Linear -> ReLU -> Linear -> residual -> [LN]."""
    x = x_ref[...]                                   # (TILE_N, d_model), native dtype
    x_f32 = x.astype(jnp.float32)
    gamma = gamma_ref[...].astype(jnp.float32)       # (1, d_model)
    beta = beta_ref[...].astype(jnp.float32)         # (1, d_model)

    def layer_norm(v):
        # Single-pass statistics: E[x] and E[x^2] are independent reductions.
        mu = jnp.mean(v, axis=-1, keepdims=True)
        ms = jnp.mean(v * v, axis=-1, keepdims=True)
        var = ms - mu * mu
        return (v - mu) * lax.rsqrt(var + eps) * gamma + beta

    if pre_lnorm:
        h = layer_norm(x_f32).astype(w1_ref.dtype)
    else:
        h = x.astype(w1_ref.dtype)

    # Linear(d_model -> d_inner): native-dtype operands, f32 MXU accumulate.
    h1 = jnp.dot(h, w1_ref[...], preferred_element_type=jnp.float32)
    h1 = jnp.maximum(h1 + b1_ref[...].astype(jnp.float32), 0.0)   # ReLU in f32 vregs

    # Dropout: identity at inference time (no-op).

    # Linear(d_inner -> d_model): cast intermediate back to weight dtype for the MXU.
    core = jnp.dot(h1.astype(w2_ref.dtype), w2_ref[...],
                   preferred_element_type=jnp.float32)
    core = core + b2_ref[...].astype(jnp.float32)

    if pre_lnorm:
        out = core + x_f32
    else:
        out = layer_norm(x_f32 + core)

    o_ref[...] = out.astype(o_ref.dtype)


def _round_up(x, m):
    return (x + m - 1) // m * m


def positionwise_ff(inp, w1, b1, w2, b2, gamma, beta, *,
                    pre_lnorm=False, eps=1e-5):
    """inp: (seq_len, batch, d_model). Returns same shape/dtype."""
    seq_len, batch, d_model = inp.shape
    d_inner = w1.shape[1]
    n = seq_len * batch
    x2d = inp.reshape(n, d_model)

    # Row tile: 256 rows keeps the MXU M-dim full on v6e/v7x (2x256 arrays) and
    # keeps the (TILE_N, d_inner) intermediate small enough for v7x's 64 MiB
    # VMEM even at d_inner=4096.  Pad the row count so the grid divides evenly
    # (padded rows are zeros; LN(0) is finite thanks to eps, and they are
    # sliced off before returning).
    n_pad = _round_up(n, 8)
    tile_n = min(256, n_pad)
    n_pad = _round_up(n_pad, tile_n)
    if n_pad != n:
        x2d = jnp.pad(x2d, ((0, n_pad - n), (0, 0)))

    # 2-D biases / LN params so they map cleanly onto (sublane, lane) tiles.
    b1_2d = b1.reshape(1, d_inner)
    b2_2d = b2.reshape(1, d_model)
    g_2d = gamma.reshape(1, d_model)
    be_2d = beta.reshape(1, d_model)

    kernel = functools.partial(_ff_kernel, pre_lnorm=pre_lnorm, eps=eps)

    grid = (n_pad // tile_n,)

    # Weights / biases / LN params: constant index map -> DMA'd once, stay
    # VMEM-resident across the whole row grid.
    const = lambda shape: pl.BlockSpec(shape, lambda i: (0,) * len(shape))

    out2d = pl.pallas_call(
        kernel,
        out_shape=jax.ShapeDtypeStruct((n_pad, d_model), inp.dtype),
        grid=grid,
        in_specs=[
            pl.BlockSpec((tile_n, d_model), lambda i: (i, 0)),   # x rows (streamed)
            const((d_model, d_inner)),                           # w1 (resident)
            const((1, d_inner)),                                 # b1
            const((d_inner, d_model)),                           # w2 (resident)
            const((1, d_model)),                                 # b2
            const((1, d_model)),                                 # gamma
            const((1, d_model)),                                 # beta
        ],
        out_specs=pl.BlockSpec((tile_n, d_model), lambda i: (i, 0)),
        compiler_params=pltpu.CompilerParams(
            # Row axis is independent work -> megacore sharding on v7x (2 TCs).
            dimension_semantics=("parallel",),
            vmem_limit_bytes=64 * 1024 * 1024,
        ),
    )(x2d, w1, b1_2d, w2, b2_2d, g_2d, be_2d)

    # TODO(synk): for lane-dense output stores, production d_model should be a
    # multiple of 128 (pad the model dim in the wrapper if it is not).
    return out2d[:n].reshape(seq_len, batch, d_model)


def _reference(inp, w1, b1, w2, b2, gamma, beta, *, pre_lnorm=False, eps=1e-5):
    """Pure-JAX reference matching the PyTorch module (eval mode)."""
    def ln(v):
        mu = jnp.mean(v, axis=-1, keepdims=True)
        var = jnp.mean(jnp.square(v - mu), axis=-1, keepdims=True)
        return (v - mu) / jnp.sqrt(var + eps) * gamma + beta

    def core(v):
        h = jnp.maximum(v @ w1 + b1, 0.0)
        return h @ w2 + b2

    if pre_lnorm:
        return core(ln(inp)) + inp
    return ln(inp + core(inp))


if __name__ == "__main__":
    # Small shapes consistent with the module: (seq_len, batch, d_model)
    seq_len, batch, d_model, d_inner = 8, 2, 32, 64
    eps = 1e-5

    key = jax.random.PRNGKey(0)
    k_x, k_w1, k_b1, k_w2, k_b2, k_g, k_be = jax.random.split(key, 7)

    inp = jax.random.normal(k_x, (seq_len, batch, d_model), dtype=jnp.float32)
    # Deterministic synthetic parameters (shapes from nn.Linear / nn.LayerNorm).
    w1 = jax.random.normal(k_w1, (d_model, d_inner), dtype=jnp.float32) * 0.05
    b1 = jax.random.normal(k_b1, (d_inner,), dtype=jnp.float32) * 0.01
    w2 = jax.random.normal(k_w2, (d_inner, d_model), dtype=jnp.float32) * 0.05
    b2 = jax.random.normal(k_b2, (d_model,), dtype=jnp.float32) * 0.01
    gamma = jnp.ones((d_model,), dtype=jnp.float32) + 0.1 * jax.random.normal(
        k_g, (d_model,), dtype=jnp.float32)
    beta = 0.1 * jax.random.normal(k_be, (d_model,), dtype=jnp.float32)

    ok = True
    for pre_lnorm in (False, True):
        out = positionwise_ff(inp, w1, b1, w2, b2, gamma, beta,
                              pre_lnorm=pre_lnorm, eps=eps)
        out = jax.block_until_ready(out)
        ref = _reference(inp, w1, b1, w2, b2, gamma, beta,
                         pre_lnorm=pre_lnorm, eps=eps)
        if not jnp.allclose(out, ref, atol=1e-4, rtol=1e-4):
            ok = False

    if ok:
        print("KERNEL_OK")
</pallas_src>

<mosaic_0001>
module attributes {stable_mosaic.version = 11 : i64} {
  func.func @_ff_kernel(%arg0: i32, %arg1: memref<16x32xf32, #tpu.memory_space<vmem>>, %arg2: memref<32x64xf32, #tpu.memory_space<vmem>>, %arg3: memref<1x64xf32, #tpu.memory_space<vmem>>, %arg4: memref<64x32xf32, #tpu.memory_space<vmem>>, %arg5: memref<1x32xf32, #tpu.memory_space<vmem>>, %arg6: memref<1x32xf32, #tpu.memory_space<vmem>>, %arg7: memref<1x32xf32, #tpu.memory_space<vmem>>, %arg8: memref<16x32xf32, #tpu.memory_space<vmem>>) attributes {dimension_semantics = [#tpu.dimension_semantics<parallel>], iteration_bounds = array<i64: 1>, scalar_prefetch = 0 : i64, scratch_operands = 0 : i64, tpu.core_type = #tpu.core_type<tc>, window_params = [{transform_indices = @transform_0, window_bounds = array<i64: 16, 32>}, {pipeline_mode = #tpu.pipeline_mode<synchronous>, transform_indices = @transform_1, window_bounds = array<i64: 32, 64>}, {pipeline_mode = #tpu.pipeline_mode<synchronous>, transform_indices = @transform_2, window_bounds = array<i64: 1, 64>}, {pipeline_mode = #tpu.pipeline_mode<synchronous>, transform_indices = @transform_3, window_bounds = array<i64: 64, 32>}, {pipeline_mode = #tpu.pipeline_mode<synchronous>, transform_indices = @transform_4, window_bounds = array<i64: 1, 32>}, {pipeline_mode = #tpu.pipeline_mode<synchronous>, transform_indices = @transform_5, window_bounds = array<i64: 1, 32>}, {pipeline_mode = #tpu.pipeline_mode<synchronous>, transform_indices = @transform_6, window_bounds = array<i64: 1, 32>}, {transform_indices = @transform_7, window_bounds = array<i64: 16, 32>}]} {
    %c0 = arith.constant 0 : index
    %c0_0 = arith.constant 0 : index
    %0 = vector.load %arg1[%c0, %c0_0] : memref<16x32xf32, #tpu.memory_space<vmem>>, vector<16x32xf32>
    %c0_1 = arith.constant 0 : index
    %c0_2 = arith.constant 0 : index
    %1 = vector.load %arg6[%c0_1, %c0_2] : memref<1x32xf32, #tpu.memory_space<vmem>>, vector<1x32xf32>
    %c0_3 = arith.constant 0 : index
    %c0_4 = arith.constant 0 : index
    %2 = vector.load %arg7[%c0_3, %c0_4] : memref<1x32xf32, #tpu.memory_space<vmem>>, vector<1x32xf32>
    %c0_5 = arith.constant 0 : index
    %c0_6 = arith.constant 0 : index
    %3 = vector.load %arg2[%c0_5, %c0_6] : memref<32x64xf32, #tpu.memory_space<vmem>>, vector<32x64xf32>
    %cst = arith.constant dense<0.000000e+00> : vector<16x64xf32>
    %4 = tpu.matmul %0, %3, %cst {dimension_numbers = #tpu.dot_dimension_numbers<[1], [0], [0], [1], [0, 0, 1, 1], [], []>} : vector<16x32xf32>, vector<32x64xf32>, vector<16x64xf32> -> vector<16x64xf32>
    %c0_7 = arith.constant 0 : index
    %c0_8 = arith.constant 0 : index
    %5 = vector.load %arg3[%c0_7, %c0_8] : memref<1x64xf32, #tpu.memory_space<vmem>>, vector<1x64xf32>
    %6 = vector.broadcast %5 : vector<1x64xf32> to vector<16x64xf32>
    %7 = arith.addf %4, %6 : vector<16x64xf32>
    %cst_9 = arith.constant 0.000000e+00 : f32
    %8 = vector.broadcast %cst_9 : f32 to vector<16x64xf32>
    %9 = arith.maximumf %7, %8 : vector<16x64xf32>
    %c0_10 = arith.constant 0 : index
    %c0_11 = arith.constant 0 : index
    %10 = vector.load %arg4[%c0_10, %c0_11] : memref<64x32xf32, #tpu.memory_space<vmem>>, vector<64x32xf32>
    %cst_12 = arith.constant dense<0.000000e+00> : vector<16x32xf32>
    %11 = tpu.matmul %9, %10, %cst_12 {dimension_numbers = #tpu.dot_dimension_numbers<[1], [0], [0], [1], [0, 0, 1, 1], [], []>} : vector<16x64xf32>, vector<64x32xf32>, vector<16x32xf32> -> vector<16x32xf32>
    %c0_13 = arith.constant 0 : index
    %c0_14 = arith.constant 0 : index
    %12 = vector.load %arg5[%c0_13, %c0_14] : memref<1x32xf32, #tpu.memory_space<vmem>>, vector<1x32xf32>
    %13 = vector.broadcast %12 : vector<1x32xf32> to vector<16x32xf32>
    %14 = arith.addf %11, %13 : vector<16x32xf32>
    %15 = arith.addf %0, %14 : vector<16x32xf32>
    %cst_15 = arith.constant dense<0.000000e+00> : vector<16xf32>
    %16 = vector.multi_reduction <add>, %15, %cst_15 [1] : vector<16x32xf32> to vector<16xf32>
    %17 = vector.shape_cast %16 : vector<16xf32> to vector<16x1xf32>
    %cst_16 = arith.constant 3.200000e+01 : f32
    %18 = vector.broadcast %cst_16 : f32 to vector<16x1xf32>
    %19 = arith.divf %17, %18 : vector<16x1xf32>
    %20 = arith.mulf %15, %15 : vector<16x32xf32>
    %cst_17 = arith.constant dense<0.000000e+00> : vector<16xf32>
    %21 = vector.multi_reduction <add>, %20, %cst_17 [1] : vector<16x32xf32> to vector<16xf32>
    %22 = vector.shape_cast %21 : vector<16xf32> to vector<16x1xf32>
    %cst_18 = arith.constant 3.200000e+01 : f32
    %23 = vector.broadcast %cst_18 : f32 to vector<16x1xf32>
    %24 = arith.divf %22, %23 : vector<16x1xf32>
    %25 = arith.mulf %19, %19 : vector<16x1xf32>
    %26 = arith.subf %24, %25 : vector<16x1xf32>
    %27 = vector.broadcast %19 : vector<16x1xf32> to vector<16x32xf32>
    %28 = arith.subf %15, %27 : vector<16x32xf32>
    %cst_19 = arith.constant 9.99999974E-6 : f32
    %29 = vector.broadcast %cst_19 : f32 to vector<16x1xf32>
    %30 = arith.addf %26, %29 : vector<16x1xf32>
    %31 = math.rsqrt %30 : vector<16x1xf32>
    %32 = vector.broadcast %31 : vector<16x1xf32> to vector<16x32xf32>
    %33 = arith.mulf %28, %32 : vector<16x32xf32>
    %34 = vector.broadcast %1 : vector<1x32xf32> to vector<16x32xf32>
    %35 = arith.mulf %33, %34 : vector<16x32xf32>
    %36 = vector.broadcast %2 : vector<1x32xf32> to vector<16x32xf32>
    %37 = arith.addf %35, %36 : vector<16x32xf32>
    %c0_20 = arith.constant 0 : index
    %c0_21 = arith.constant 0 : index
    %38 = vector.load %arg8[%c0_20, %c0_21] : memref<16x32xf32, #tpu.memory_space<vmem>>, vector<16x32xf32>
    tpu.vector_store %arg8[%c0_20, %c0_21], %37 {strides = array<i32>} : memref<16x32xf32, #tpu.memory_space<vmem>>, vector<16x32xf32>,
    return
  }
  func.func @transform_0(%arg0: i32) -> (i32, i32) {
    %c0_i32 = arith.constant 0 : i32
    %c0_i32_0 = arith.constant 0 : i32
    return %arg0, %c0_i32 : i32, i32
  }
  func.func @transform_1(%arg0: i32) -> (i32, i32) {
    %c0_i32 = arith.constant 0 : i32
    %c0_i32_0 = arith.constant 0 : i32
    %c0_i32_1 = arith.constant 0 : i32
    return %c0_i32, %c0_i32_0 : i32, i32
  }
  func.func @transform_2(%arg0: i32) -> (i32, i32) {
    %c0_i32 = arith.constant 0 : i32
    %c0_i32_0 = arith.constant 0 : i32
    %c0_i32_1 = arith.constant 0 : i32
    return %c0_i32, %c0_i32_0 : i32, i32
  }
  func.func @transform_3(%arg0: i32) -> (i32, i32) {
    %c0_i32 = arith.constant 0 : i32
    %c0_i32_0 = arith.constant 0 : i32
    %c0_i32_1 = arith.constant 0 : i32
    return %c0_i32, %c0_i32_0 : i32, i32
  }
  func.func @transform_4(%arg0: i32) -> (i32, i32) {
    %c0_i32 = arith.constant 0 : i32
    %c0_i32_0 = arith.constant 0 : i32
    %c0_i32_1 = arith.constant 0 : i32
    return %c0_i32, %c0_i32_0 : i32, i32
  }
  func.func @transform_5(%arg0: i32) -> (i32, i32) {
    %c0_i32 = arith.constant 0 : i32
    %c0_i32_0 = arith.constant 0 : i32
    %c0_i32_1 = arith.constant 0 : i32
    return %c0_i32, %c0_i32_0 : i32, i32
  }
  func.func @transform_6(%arg0: i32) -> (i32, i32) {
    %c0_i32 = arith.constant 0 : i32
    %c0_i32_0 = arith.constant 0 : i32
    %c0_i32_1 = arith.constant 0 : i32
    return %c0_i32, %c0_i32_0 : i32, i32
  }
  func.func @transform_7(%arg0: i32) -> (i32, i32) {
    %c0_i32 = arith.constant 0 : i32
    %c0_i32_0 = arith.constant 0 : i32
    return %arg0, %c0_i32 : i32, i32
  }
}

</mosaic_0001>

<llo_original>
// kernel: tpu_custom_call.1
$region0: #{tpu_custom_call.1}
  #allocation0 [shape = 'u32[]', space=smem, size = 0x4, offset = 0x4, fixed_abs, tag = 'smem constant byte address 0x4 - core index']
  #allocation1 [shape = 'u32[144,128]{1,0:T(1,128)}', space=vmem, size = 0x12000, scoped, tag = 'internal scratch']
  %s0 = inlined_call_operand.hbm [shape: f32[16,32], index: 0, kind: input, shape index: {}]
  %s1 = inlined_call_operand.hbm [shape: f32[32,64], index: 1, kind: input, shape index: {}]
  %s2 = inlined_call_operand.hbm [shape: f32[1,64], index: 2, kind: input, shape index: {}]
  %s3 = inlined_call_operand.hbm [shape: f32[64,32], index: 3, kind: input, shape index: {}]
  %s4 = inlined_call_operand.hbm [shape: f32[1,32], index: 4, kind: input, shape index: {}]
  %s5 = inlined_call_operand.hbm [shape: f32[1,32], index: 5, kind: input, shape index: {}]
  %s6 = inlined_call_operand.hbm [shape: f32[1,32], index: 6, kind: input, shape index: {}]
  %s7 = inlined_call_operand.hbm [shape: f32[16,32], index: 7, kind: output, shape index: {}]
  %s8 = sld [smem:[#allocation0]]
  $region66: #{tpu_custom_call.1} parent=0
    _
  %s10 = ssub.s32 1, %s8
  %s11 = scalar_select 0, %s10, %s8
  $region1: #{tpu_custom_call.1} parent=0
    #allocation2 [shape = 'u8[8192]{0}', space=vmem, size = 0x2000, scoped, tag = 'input window, operand 0, single buffered']
    #allocation3 [shape = 's32[1]{0}', space=sflag, size = 0x4, scoped, tag = 'scoped memory for tpu_custom_call.1']
    #allocation4 [shape = 's32[1]{0}', space=sflag, size = 0x4, scoped, tag = 'scoped memory for tpu_custom_call.1']
    #allocation5 [shape = 'u8[16384]{0}', space=vmem, size = 0x4000, scoped, tag = 'input window, operand 1, single buffered']
    #allocation6 [shape = 's32[1]{0}', space=sflag, size = 0x4, scoped, tag = 'scoped memory for tpu_custom_call.1']
    #allocation7 [shape = 'u8[512]{0}', space=vmem, size = 0x400, scoped, tag = 'input window, operand 2, single buffered']
    #allocation8 [shape = 'u8[32768]{0}', space=vmem, size = 0x8000, scoped, tag = 'input window, operand 3, single buffered']
    #allocation9 [shape = 's32[1]{0}', space=sflag, size = 0x4, scoped, tag = 'scoped memory for tpu_custom_call.1']
    #allocation10 [shape = 'u8[512]{0}', space=vmem, size = 0x400, scoped, tag = 'input window, operand 4, single buffered']
    #allocation11 [shape = 'u8[512]{0}', space=vmem, size = 0x400, scoped, tag = 'input window, operand 5, single buffered']
    #allocation12 [shape = 's32[1]{0}', space=sflag, size = 0x4, scoped, tag = 'scoped memory for tpu_custom_call.1']
    #allocation13 [shape = 'u8[512]{0}', space=vmem, size = 0x400, scoped, tag = 'input window, operand 6, single buffered']
    #allocation14 [shape = 'u8[8192]{0}', space=vmem, size = 0x2000, scoped, tag = 'output window, operand 0, single buffered']
    %12 = vsyncpa [#allocation3], 0
    %13 = vsyncpa [#allocation6], 0
    %14 = vsyncpa [#allocation9], 0
    %15 = vsyncpa [#allocation12], 0
    %16 = vsyncpa [#allocation4], 0
    // Predicated region
    $region2: #{tpu_custom_call.1} parent=1 // pred_check
      _
    $region3: #{tpu_custom_call.1} parent=1 // pred_check_branch
      %18 = sbr.rel (0) target = $region5
    $region4: #{tpu_custom_call.1} parent=1 // pred_region
      %s20 = ssub.s32 256, 256
      %21 = vsyncadd [#allocation3], %s20
      %s22 = sshll.u32 [#allocation2], 4
      %s23 = int_to_ptr.vmem [resolvable:$true] %s22
      %28 = dma.hbm_to_vmem [thread:$0]  %s0, 256, %s23, [#allocation3], 128, 128, 8
    $region5: #{tpu_custom_call.1} parent=1 // pred_fallthru
      _
    // Predicated region
    $region6: #{tpu_custom_call.1} parent=1 // pred_check
      _
    $region7: #{tpu_custom_call.1} parent=1 // pred_check_branch
      %30 = sbr.rel (0) target = $region9
    $region8: #{tpu_custom_call.1} parent=1 // pred_region
      %s32 = ssub.s32 512, 512
      %33 = vsyncadd [#allocation6], %s32
      %s34 = sshll.u32 [#allocation5], 4
      %s35 = int_to_ptr.vmem [resolvable:$true] %s34
      %40 = dma.hbm_to_vmem [thread:$0]  %s1, 512, %s35, [#allocation6], 128, 128, 8
    $region9: #{tpu_custom_call.1} parent=1 // pred_fallthru
      _
    // Predicated region
    $region10: #{tpu_custom_call.1} parent=1 // pred_check
      _
    $region11: #{tpu_custom_call.1} parent=1 // pred_check_branch
      %42 = sbr.rel (0) target = $region13
    $region12: #{tpu_custom_call.1} parent=1 // pred_region
      %s44 = ssub.s32 16, 16
      %45 = vsyncadd [#allocation6], %s44
      %s47 = sshll.u32 [#allocation7], 4
      %s48 = int_to_ptr.vmem [resolvable:$true] %s47
      %50 = dma.hbm_to_vmem [thread:$0]  %s2, 16, %s48, [#allocation6]
    $region13: #{tpu_custom_call.1} parent=1 // pred_fallthru
      _
    // Predicated region
    $region14: #{tpu_custom_call.1} parent=1 // pred_check
      _
    $region15: #{tpu_custom_call.1} parent=1 // pred_check_branch
      %52 = sbr.rel (0) target = $region17
    $region16: #{tpu_custom_call.1} parent=1 // pred_region
      %s54 = ssub.s32 1024, 1024
      %55 = vsyncadd [#allocation9], %s54
      %s56 = sshll.u32 [#allocation8], 4
      %s57 = int_to_ptr.vmem [resolvable:$true] %s56
      %62 = dma.hbm_to_vmem [thread:$0]  %s3, 1024, %s57, [#allocation9], 128, 128, 8
    $region17: #{tpu_custom_call.1} parent=1 // pred_fallthru
      _
    // Predicated region
    $region18: #{tpu_custom_call.1} parent=1 // pred_check
      _
    $region19: #{tpu_custom_call.1} parent=1 // pred_check_branch
      %64 = sbr.rel (0) target = $region21
    $region20: #{tpu_custom_call.1} parent=1 // pred_region
      %s66 = ssub.s32 16, 16
      %67 = vsyncadd [#allocation9], %s66
      %s69 = sshll.u32 [#allocation10], 4
      %s70 = int_to_ptr.vmem [resolvable:$true] %s69
      %72 = dma.hbm_to_vmem [thread:$0]  %s4, 16, %s70, [#allocation9]
    $region21: #{tpu_custom_call.1} parent=1 // pred_fallthru
      _
    // Predicated region
    $region22: #{tpu_custom_call.1} parent=1 // pred_check
      _
    $region23: #{tpu_custom_call.1} parent=1 // pred_check_branch
      %74 = sbr.rel (0) target = $region25
    $region24: #{tpu_custom_call.1} parent=1 // pred_region
      %s76 = ssub.s32 16, 16
      %77 = vsyncadd [#allocation12], %s76
      %s79 = sshll.u32 [#allocation11], 4
      %s80 = int_to_ptr.vmem [resolvable:$true] %s79
      %82 = dma.hbm_to_vmem [thread:$0]  %s5, 16, %s80, [#allocation12]
    $region25: #{tpu_custom_call.1} parent=1 // pred_fallthru
      _
    // Predicated region
    $region26: #{tpu_custom_call.1} parent=1 // pred_check
      _
    $region27: #{tpu_custom_call.1} parent=1 // pred_check_branch
      %84 = sbr.rel (0) target = $region29
    $region28: #{tpu_custom_call.1} parent=1 // pred_region
      %s86 = ssub.s32 16, 16
      %87 = vsyncadd [#allocation12], %s86
      %s89 = sshll.u32 [#allocation13], 4
      %s90 = int_to_ptr.vmem [resolvable:$true] %s89
      %92 = dma.hbm_to_vmem [thread:$0]  %s6, 16, %s90, [#allocation12]
    $region29: #{tpu_custom_call.1} parent=1 // pred_fallthru
      _
    // Predicated region
    $region30: #{tpu_custom_call.1} parent=1 // pred_check
      _
    $region31: #{tpu_custom_call.1} parent=1 // pred_check_branch
      %94 = sbr.rel (0) target = $region33
    $region32: #{tpu_custom_call.1} parent=1 // pred_region
      %95 = dma.done [#allocation3], 256
    $region33: #{tpu_custom_call.1} parent=1 // pred_fallthru
      _
    // Predicated region
    $region34: #{tpu_custom_call.1} parent=1 // pred_check
      _
    $region35: #{tpu_custom_call.1} parent=1 // pred_check_branch
      %97 = sbr.rel (0) target = $region37
    $region36: #{tpu_custom_call.1} parent=1 // pred_region
      %98 = dma.done [#allocation6], 512
    $region37: #{tpu_custom_call.1} parent=1 // pred_fallthru
      _
    // Predicated region
    $region38: #{tpu_custom_call.1} parent=1 // pred_check
      _
    $region39: #{tpu_custom_call.1} parent=1 // pred_check_branch
      %100 = sbr.rel (0) target = $region41
    $region40: #{tpu_custom_call.1} parent=1 // pred_region
      %101 = dma.done [#allocation6], 16
    $region41: #{tpu_custom_call.1} parent=1 // pred_fallthru
      _
    // Predicated region
    $region42: #{tpu_custom_call.1} parent=1 // pred_check
      _
    $region43: #{tpu_custom_call.1} parent=1 // pred_check_branch
      %103 = sbr.rel (0) target = $region45
    $region44: #{tpu_custom_call.1} parent=1 // pred_region
      %104 = dma.done [#allocation9], 1024
    $region45: #{tpu_custom_call.1} parent=1 // pred_fallthru
      _
    // Predicated region
    $region46: #{tpu_custom_call.1} parent=1 // pred_check
      _
    $region47: #{tpu_custom_call.1} parent=1 // pred_check_branch
      %106 = sbr.rel (0) target = $region49
    $region48: #{tpu_custom_call.1} parent=1 // pred_region
      %107 = dma.done [#allocation9], 16
    $region49: #{tpu_custom_call.1} parent=1 // pred_fallthru
      _
    // Predicated region
    $region50: #{tpu_custom_call.1} parent=1 // pred_check
      _
    $region51: #{tpu_custom_call.1} parent=1 // pred_check_branch
      %109 = sbr.rel (0) target = $region53
    $region52: #{tpu_custom_call.1} parent=1 // pred_region
      %110 = dma.done [#allocation12], 16
    $region53: #{tpu_custom_call.1} parent=1 // pred_fallthru
      _
    // Predicated region
    $region54: #{tpu_custom_call.1} parent=1 // pred_check
      _
    $region55: #{tpu_custom_call.1} parent=1 // pred_check_branch
      %112 = sbr.rel (0) target = $region57
    $region56: #{tpu_custom_call.1} parent=1 // pred_region
      %113 = dma.done [#allocation12], 16
    $region57: #{tpu_custom_call.1} parent=1 // pred_fallthru
      _
    %v114 = vld [vmem:[#allocation2] sm:$0xff]
    %v115 = vld [vmem:[#allocation2 + $0x8] sm:$0xff]
    %v116 = vld [vmem:[#allocation11] sm:$0x1]
    %v117 = vld [vmem:[#allocation13] sm:$0x1]
    %v118 = vld [vmem:[#allocation5] sm:$0xff]
    %v119 = vld [vmem:[#allocation5 + $0x8] sm:$0xff]
    %v120 = vld [vmem:[#allocation5 + $0x10] sm:$0xff]
    %v121 = vld [vmem:[#allocation5 + $0x18] sm:$0xff]
    %v122 = vld [vmem:[#allocation7] sm:$0x1]
    %v124 = vlaneseq
    %v125 = vshrl.u32 %v124, 7
    %v126 = vsub.s32 0, %v125
    %v127 = vrot.slane %v122, %v126
    %vm129 = vcmask 261120
    %v131 = vsel %vm129, %v114, 0
    %v134 = vsel %vm129, %v115, 0
    %136 = vmatprep.subr.mxu0 0.0
    %137 = vmatpush1.msra.mxu0 %v118
    %138 = vmatprep.subr.mxu0 0.0
    %139 = vmatpush1.msra.mxu0 %v119
    %140 = vmatprep.subr.mxu0 0.0
    %141 = vmatpush1.msra.mxu0 %v120
    %142 = vmatprep.subr.mxu0 0.0
    %143 = vmatpush1.msra.mxu0 %v121
    %144 = vmatprep.subr.mxu0 0.0
    %145 = vmatpush1.msra.mxu0 0.0
    %146 = vmatprep.subr.mxu0 0.0
    %147 = vmatpush1.msra.mxu0 0.0
    %148 = vmatprep.subr.mxu0 0.0
    %149 = vmatpush1.msra.mxu0 0.0
    %150 = vmatprep.subr.mxu0 0.0
    %151 = vmatpush1.msra.mxu0 0.0
    %152 = vmatprep.subr.mxu0 0.0
    %153 = vmatpush1.msra.mxu0 0.0
    %154 = vmatprep.subr.mxu0 0.0
    %155 = vmatpush1.msra.mxu0 0.0
    %156 = vmatprep.subr.mxu0 0.0
    %157 = vmatpush1.msra.mxu0 0.0
    %158 = vmatprep.subr.mxu0 0.0
    %159 = vmatpush1.msra.mxu0 0.0
    %160 = vmatprep.subr.mxu0 0.0
    %161 = vmatpush1.msra.mxu0 0.0
    %162 = vmatprep.subr.mxu0 0.0
    %163 = vmatpush1.msra.mxu0 0.0
    %164 = vmatprep.subr.mxu0 0.0
    %165 = vmatpush1.msra.mxu0 0.0
    %166 = vmatprep.subr.mxu0 0.0
    %167 = vmatpush1.msra.mxu0 0.0
    %168 = vmatprep.subr.mxu0 0.0
    %169 = vmatpush1.msra.mxu0 0.0
    %170 = vmatprep.subr.mxu0 0.0
    %171 = vmatpush1.msra.mxu0 0.0
    %172 = vmatprep.subr.mxu0 0.0
    %173 = vmatpush1.msra.mxu0 0.0
    %174 = vmatprep.subr.mxu0 0.0
    %175 = vmatpush1.msra.mxu0 0.0
    %176 = vmatprep.subr.mxu0 0.0
    %177 = vmatpush1.msra.mxu0 0.0
    %178 = vmatprep.subr.mxu0 0.0
    %179 = vmatpush1.msra.mxu0 0.0
    %180 = vmatprep.subr.mxu0 0.0
    %181 = vmatpush1.msra.mxu0 0.0
    %182 = vmatprep.subr.mxu0 0.0
    %183 = vmatpush1.msra.mxu0 0.0
    %184 = vmatprep.subr.mxu0 0.0
    %185 = vmatpush1.msra.mxu0 0.0
    %186 = vmatprep.subr.mxu0 0.0
    %187 = vmatpush1.msra.mxu0 0.0
    %188 = vmatprep.subr.mxu0 0.0
    %189 = vmatpush1.msra.mxu0 0.0
    %190 = vmatprep.subr.mxu0 0.0
    %191 = vmatpush1.msra.mxu0 0.0
    %192 = vmatprep.subr.mxu0 0.0
    %193 = vmatpush1.msra.mxu0 0.0
    %194 = vmatprep.subr.mxu0 0.0
    %195 = vmatpush1.msra.mxu0 0.0
    %196 = vmatprep.subr.mxu0 0.0
    %197 = vmatpush1.msra.mxu0 0.0
    %198 = vmatprep.subr.mxu0 0.0
    %199 = vmatpush1.msra.mxu0 0.0
    %200 = vmatprep.mubr.f32.mxu0 0.0
    %201 = vmatmul.mubr.f32.gmra.mrb[0].mxu0 %v131
    %v202 = vpop.f32.mrb[0].mxu0
    %v203 = vadd.f32 %v127, %v202
    %v204 = vpop.f32.mrb[0].mxu0
    %205 = vmatprep.mubr.f32.mxu0 0.0
    %206 = vmatmul.mubr.f32.gmra.mrb[0].mxu0 %v134
    %v207 = vpop.f32.mrb[0].mxu0
    %v208 = vadd.f32 %v127, %v207
    %v209 = vpop.f32.mrb[0].mxu0
    %210 = vdwg.mxu0
    %v211 = vmax.f32 %v203, 0.0
    %v212 = vmax.f32 %v208, 0.0
    %v213 = vld [vmem:[#allocation8] sm:$0xff]
    %v214 = vld [vmem:[#allocation8 + $0x8] sm:$0xff]
    %v215 = vld [vmem:[#allocation8 + $0x10] sm:$0xff]
    %v216 = vld [vmem:[#allocation8 + $0x18] sm:$0xff]
    %v217 = vld [vmem:[#allocation8 + $0x20] sm:$0xff]
    %v218 = vld [vmem:[#allocation8 + $0x28] sm:$0xff]
    %v219 = vld [vmem:[#allocation8 + $0x30] sm:$0xff]
    %v220 = vld [vmem:[#allocation8 + $0x38] sm:$0xff]
    %v221 = vld [vmem:[#allocation10] sm:$0x1]
    %v223 = vlaneseq
    %v224 = vshrl.u32 %v223, 7
    %v225 = vsub.s32 0, %v224
    %v226 = vrot.slane %v221, %v225
    %vm228 = vcmask 523264
    %v230 = vsel %vm228, %v211, 0
    %v233 = vsel %vm228, %v212, 0
    %235 = vmatprep.subr.mxu0 0.0
    %236 = vmatpush1.msra.mxu0 %v213
    %237 = vmatprep.subr.mxu0 0.0
    %238 = vmatpush1.msra.mxu0 %v214
    %239 = vmatprep.subr.mxu0 0.0
    %240 = vmatpush1.msra.mxu0 %v215
    %241 = vmatprep.subr.mxu0 0.0
    %242 = vmatpush1.msra.mxu0 %v216
    %243 = vmatprep.subr.mxu0 0.0
    %244 = vmatpush1.msra.mxu0 %v217
    %245 = vmatprep.subr.mxu0 0.0
    %246 = vmatpush1.msra.mxu0 %v218
    %247 = vmatprep.subr.mxu0 0.0
    %248 = vmatpush1.msra.mxu0 %v219
    %249 = vmatprep.subr.mxu0 0.0
    %250 = vmatpush1.msra.mxu0 %v220
    %251 = vmatprep.subr.mxu0 0.0
    %252 = vmatpush1.msra.mxu0 0.0
    %253 = vmatprep.subr.mxu0 0.0
    %254 = vmatpush1.msra.mxu0 0.0
    %255 = vmatprep.subr.mxu0 0.0
    %256 = vmatpush1.msra.mxu0 0.0
    %257 = vmatprep.subr.mxu0 0.0
    %258 = vmatpush1.msra.mxu0 0.0
    %259 = vmatprep.subr.mxu0 0.0
    %260 = vmatpush1.msra.mxu0 0.0
    %261 = vmatprep.subr.mxu0 0.0
    %262 = vmatpush1.msra.mxu0 0.0
    %263 = vmatprep.subr.mxu0 0.0
    %264 = vmatpush1.msra.mxu0 0.0
    %265 = vmatprep.subr.mxu0 0.0
    %266 = vmatpush1.msra.mxu0 0.0
    %267 = vmatprep.subr.mxu0 0.0
    %268 = vmatpush1.msra.mxu0 0.0
    %269 = vmatprep.subr.mxu0 0.0
    %270 = vmatpush1.msra.mxu0 0.0
    %271 = vmatprep.subr.mxu0 0.0
    %272 = vmatpush1.msra.mxu0 0.0
    %273 = vmatprep.subr.mxu0 0.0
    %274 = vmatpush1.msra.mxu0 0.0
    %275 = vmatprep.subr.mxu0 0.0
    %276 = vmatpush1.msra.mxu0 0.0
    %277 = vmatprep.subr.mxu0 0.0
    %278 = vmatpush1.msra.mxu0 0.0
    %279 = vmatprep.subr.mxu0 0.0
    %280 = vmatpush1.msra.mxu0 0.0
    %281 = vmatprep.subr.mxu0 0.0
    %282 = vmatpush1.msra.mxu0 0.0
    %283 = vmatprep.subr.mxu0 0.0
    %284 = vmatpush1.msra.mxu0 0.0
    %285 = vmatprep.subr.mxu0 0.0
    %286 = vmatpush1.msra.mxu0 0.0
    %287 = vmatprep.subr.mxu0 0.0
    %288 = vmatpush1.msra.mxu0 0.0
    %289 = vmatprep.subr.mxu0 0.0
    %290 = vmatpush1.msra.mxu0 0.0
    %291 = vmatprep.subr.mxu0 0.0
    %292 = vmatpush1.msra.mxu0 0.0
    %293 = vmatprep.subr.mxu0 0.0
    %294 = vmatpush1.msra.mxu0 0.0
    %295 = vmatprep.subr.mxu0 0.0
    %296 = vmatpush1.msra.mxu0 0.0
    %297 = vmatprep.subr.mxu0 0.0
    %298 = vmatpush1.msra.mxu0 0.0
    %299 = vmatprep.mubr.f32.mxu0 0.0
    %300 = vmatmul.mubr.f32.gmra.mrb[0].mxu0 %v230
    %v301 = vpop.f32.mrb[0].mxu0
    %v302 = vadd.f32 %v226, %v301
    %v303 = vpop.f32.mrb[0].mxu0
    %304 = vmatprep.mubr.f32.mxu0 0.0
    %305 = vmatmul.mubr.f32.gmra.mrb[0].mxu0 %v233
    %v306 = vpop.f32.mrb[0].mxu0
    %v307 = vadd.f32 %v226, %v306
    %v308 = vpop.f32.mrb[0].mxu0
    %309 = vdwg.mxu0
    %v310 = vadd.f32 %v114, %v302
    %v311 = vadd.f32 %v115, %v307
    %v312 = vsel %vm129, %v310, 0.0
    %313 = vadd.xlane.f32.xlu0 %v312
    %v314 = vpop.xlane.xlu0 %313
    %v315 = vsel %vm129, %v311, 0.0
    %316 = vadd.xlane.f32.xlu0 %v315
    %v317 = vpop.xlane.xlu0 %316
    %v318 = vrcp.pop 32.0
    %v319 = vmul.f32 %v314, %v318
    %v320 = vmul.f32 %v317, %v318
    %v321 = vmul.f32 %v310, %v310
    %v322 = vmul.f32 %v311, %v311
    %v323 = vsel %vm129, %v321, 0.0
    %324 = vadd.xlane.f32.xlu0 %v323
    %v325 = vpop.xlane.xlu0 %324
    %v326 = vsel %vm129, %v322, 0.0
    %327 = vadd.xlane.f32.xlu0 %v326
    %v328 = vpop.xlane.xlu0 %327
    %v329 = vmul.f32 %v325, %v318
    %v330 = vmul.f32 %v328, %v318
    %v331 = vmul.f32 %v319, %v319
    %v332 = vmul.f32 %v320, %v320
    %v333 = vsub.f32 %v329, %v331
    %v334 = vsub.f32 %v330, %v332
    %v335 = vsub.f32 %v310, %v319
    %v336 = vsub.f32 %v311, %v320
    %v337 = vadd.f32 %v333, 1e-05
    %v338 = vadd.f32 %v334, 1e-05
    %v339 = vrsqrt.pop %v337
    %v340 = vrsqrt.pop %v338
    %v341 = vmul.f32 %v335, %v339
    %v342 = vmul.f32 %v336, %v340
    %v344 = vlaneseq
    %v345 = vshrl.u32 %v344, 7
    %v346 = vsub.s32 0, %v345
    %v347 = vrot.slane %v116, %v346
    %v349 = vmul.f32 %v341, %v347
    %v350 = vmul.f32 %v342, %v347
    %v352 = vlaneseq
    %v353 = vshrl.u32 %v352, 7
    %v354 = vsub.s32 0, %v353
    %v355 = vrot.slane %v117, %v354
    %v357 = vadd.f32 %v349, %v355
    %v358 = vadd.f32 %v350, %v355
    %359 = vst.msk [vmem:[#allocation14] sm:$0xff] %vm129, %v357
    %360 = vst.msk [vmem:[#allocation14 + $0x8] sm:$0xff] %vm129, %v358
    // Predicated region
    $region58: #{tpu_custom_call.1} parent=1 // pred_check
      _
    $region59: #{tpu_custom_call.1} parent=1 // pred_check_branch
      %362 = sbr.rel (0) target = $region61
    $region60: #{tpu_custom_call.1} parent=1 // pred_region
      %s364 = ssub.s32 256, 256
      %365 = vsyncadd [#allocation4], %s364
      %s366 = sshll.u32 [#allocation14], 4
      %s367 = int_to_ptr.vmem [resolvable:$true] %s366
      %372 = dma.vmem_to_hbm [thread:$0]  %s367, 256, %s7, [#allocation4], 128, 128, 8
    $region61: #{tpu_custom_call.1} parent=1 // pred_fallthru
      _
    // Predicated region
    $region62: #{tpu_custom_call.1} parent=1 // pred_check
      _
    $region63: #{tpu_custom_call.1} parent=1 // pred_check_branch
      %374 = sbr.rel (0) target = $region65
    $region64: #{tpu_custom_call.1} parent=1 // pred_region
      %375 = dma.done [#allocation4], 256
    $region65: #{tpu_custom_call.1} parent=1 // pred_fallthru
      _
    %376 = vsyncpa [#allocation3], 1
    %377 = vsyncpa [#allocation6], 1
    %378 = vsyncpa [#allocation9], 1
    %379 = vsyncpa [#allocation12], 1
    %380 = vsyncpa [#allocation4], 1

</llo_original>
